<compile_context>
chip_gen: v5e
topology: v5e:2x2
jax: 0.10.0
libtpu: 0.0.40
codegen_flags: <defaults>
</compile_context>

<pallas_src>
import jax
import jax.numpy as jnp
from jax.experimental import pallas as pl
from jax.experimental.pallas import tpu as pltpu

NUM_FEATURES = 8
HIDDEN = 32
NUM_LAYERS = 3
BATCH = 16
PAD = 128                       # lane-dense feature/hidden padding
N_LINEAR = 2 * NUM_LAYERS + 1   # 3 encoder + 3 decoder + final projection
B_ROWS = 8                      # bias slab rows (N_LINEAR padded to sublane multiple)


def mlp_mae_kernel(x_ref, w_ref, b_ref, out_ref):
    """x_ref: (B, 128); w_ref: (7*128, 128) packed weights; b_ref: (8, 128) packed biases."""
    b_all = b_ref[...]                      # tiny: 8x128 f32
    h = x_ref[...]
    # encoder + decoder hidden layers: Linear (+ folded BatchNorm) + ReLU
    for li in range(N_LINEAR - 1):
        w = w_ref[pl.ds(li * PAD, PAD), :]  # static per-layer slice of the slab
        h = jnp.dot(h, w, preferred_element_type=jnp.float32)
        h = jnp.maximum(h + b_all[li:li + 1, :], 0.0)
    # final Linear(hidden -> num_features): no BN, no ReLU
    w = w_ref[pl.ds((N_LINEAR - 1) * PAD, PAD), :]
    h = jnp.dot(h, w, preferred_element_type=jnp.float32)
    out_ref[...] = (h + b_all[N_LINEAR - 1:N_LINEAR, :]).astype(out_ref.dtype)


def _pack_params(weights, biases):
    """Pack per-layer (in,out) weights / (1,out) biases into lane-dense zero-padded slabs."""
    w_slab = jnp.zeros((N_LINEAR * PAD, PAD), jnp.float32)
    b_slab = jnp.zeros((B_ROWS, PAD), jnp.float32)
    for li, (w, b) in enumerate(zip(weights, biases)):
        din, dout = w.shape
        w_slab = w_slab.at[li * PAD:li * PAD + din, :dout].set(w)
        b_slab = b_slab.at[li, :dout].set(b.reshape(-1))
    return w_slab, b_slab


def water_quality_mlp_mae(x, weights, biases):
    B, F = x.shape
    # Lane-dense input: pad feature dim to 128 with zeros.
    x_pad = jnp.zeros((B, PAD), jnp.float32).at[:, :F].set(x)
    w_slab, b_slab = _pack_params(weights, biases)

    out_pad = pl.pallas_call(
        mlp_mae_kernel,
        out_shape=jax.ShapeDtypeStruct((B, PAD), jnp.float32),
        grid=(1,),  # single step: whole problem (~0.5 MB) fits VMEM everywhere
        in_specs=[
            pl.BlockSpec((B, PAD), lambda i: (0, 0)),
            pl.BlockSpec((N_LINEAR * PAD, PAD), lambda i: (0, 0)),
            pl.BlockSpec((B_ROWS, PAD), lambda i: (0, 0)),
        ],
        out_specs=pl.BlockSpec((B, PAD), lambda i: (0, 0)),
    )(x_pad, w_slab, b_slab)
    return out_pad[:, :F]


def _make_params(key):
    """Deterministic synthetic parameters; BatchNorm folded into Linear."""
    dims = []
    d_in = NUM_FEATURES
    for _ in range(NUM_LAYERS):            # encoder
        dims.append((d_in, HIDDEN))
        d_in = HIDDEN
    for _ in range(NUM_LAYERS):            # decoder hidden layers
        dims.append((HIDDEN, HIDDEN))
    dims.append((HIDDEN, NUM_FEATURES))    # final projection

    eps = 1e-5
    weights, biases = [], []
    for li, (din, dout) in enumerate(dims):
        key, kw, kb = jax.random.split(key, 3)
        w = jax.random.normal(kw, (din, dout), jnp.float32) / jnp.sqrt(float(din))
        b = 0.01 * jax.random.normal(kb, (dout,), jnp.float32)
        if li < N_LINEAR - 1:
            # deterministic, non-trivial BatchNorm1d parameters (eval mode)
            r = jnp.arange(dout, dtype=jnp.float32)
            gamma = 1.0 + 0.01 * r
            beta = 0.02 * r
            mean = 0.05 * jnp.sin(r)
            var = 1.0 + 0.1 * jnp.cos(r) ** 2
            scale = gamma / jnp.sqrt(var + eps)
            w = w * scale[None, :]
            b = (b - mean) * scale + beta
        weights.append(w)
        biases.append(b.reshape(1, dout))
    return weights, biases


def _reference(x, weights, biases):
    h = x
    for li in range(N_LINEAR - 1):
        h = jnp.maximum(h @ weights[li] + biases[li], 0.0)
    return h @ weights[N_LINEAR - 1] + biases[N_LINEAR - 1]


if __name__ == "__main__":
    key = jax.random.PRNGKey(0)
    key, kx = jax.random.split(key)
    x = jax.random.normal(kx, (BATCH, NUM_FEATURES), jnp.float32)
    weights, biases = _make_params(key)

    out = water_quality_mlp_mae(x, weights, biases)
    out = jax.block_until_ready(out)

    ref = _reference(x, weights, biases)
    assert out.shape == (BATCH, NUM_FEATURES)
    assert jnp.allclose(out, ref, atol=1e-4, rtol=1e-4)
    print("KERNEL_OK")
</pallas_src>

<mosaic_0001>
module attributes {stable_mosaic.version = 11 : i64} {
  func.func @mlp_mae_kernel(%arg0: i32, %arg1: memref<16x128xf32, #tpu.memory_space<vmem>>, %arg2: memref<896x128xf32, #tpu.memory_space<vmem>>, %arg3: memref<8x128xf32, #tpu.memory_space<vmem>>, %arg4: memref<16x128xf32, #tpu.memory_space<vmem>>) attributes {dimension_semantics = [#tpu.dimension_semantics<arbitrary>], iteration_bounds = array<i64: 1>, scalar_prefetch = 0 : i64, scratch_operands = 0 : i64, tpu.core_type = #tpu.core_type<tc>, window_params = [{pipeline_mode = #tpu.pipeline_mode<synchronous>, transform_indices = @transform_0, window_bounds = array<i64: 16, 128>}, {pipeline_mode = #tpu.pipeline_mode<synchronous>, transform_indices = @transform_1, window_bounds = array<i64: 896, 128>}, {pipeline_mode = #tpu.pipeline_mode<synchronous>, transform_indices = @transform_2, window_bounds = array<i64: 8, 128>}, {pipeline_mode = #tpu.pipeline_mode<synchronous>, transform_indices = @transform_3, window_bounds = array<i64: 16, 128>}]} {
    %c0 = arith.constant 0 : index
    %c0_0 = arith.constant 0 : index
    %0 = vector.load %arg3[%c0, %c0_0] : memref<8x128xf32, #tpu.memory_space<vmem>>, vector<8x128xf32>
    %c0_1 = arith.constant 0 : index
    %c0_2 = arith.constant 0 : index
    %1 = vector.load %arg1[%c0_1, %c0_2] : memref<16x128xf32, #tpu.memory_space<vmem>>, vector<16x128xf32>
    %c0_3 = arith.constant 0 : index
    %c0_4 = arith.constant 0 : index
    %2 = vector.load %arg2[%c0_3, %c0_4] : memref<896x128xf32, #tpu.memory_space<vmem>>, vector<128x128xf32>
    %cst = arith.constant dense<0.000000e+00> : vector<16x128xf32>
    %3 = tpu.matmul %1, %2, %cst {dimension_numbers = #tpu.dot_dimension_numbers<[1], [0], [0], [1], [0, 0, 1, 1], [], []>} : vector<16x128xf32>, vector<128x128xf32>, vector<16x128xf32> -> vector<16x128xf32>
    %4 = vector.extract_strided_slice %0 {offsets = [0, 0], sizes = [1, 128], strides = [1, 1]} : vector<8x128xf32> to vector<1x128xf32>
    %5 = vector.broadcast %4 : vector<1x128xf32> to vector<16x128xf32>
    %6 = arith.addf %3, %5 : vector<16x128xf32>
    %cst_5 = arith.constant 0.000000e+00 : f32
    %7 = vector.broadcast %cst_5 : f32 to vector<16x128xf32>
    %8 = arith.maximumf %6, %7 : vector<16x128xf32>
    %c128 = arith.constant 128 : index
    %c0_6 = arith.constant 0 : index
    %9 = vector.load %arg2[%c128, %c0_6] : memref<896x128xf32, #tpu.memory_space<vmem>>, vector<128x128xf32>
    %cst_7 = arith.constant dense<0.000000e+00> : vector<16x128xf32>
    %10 = tpu.matmul %8, %9, %cst_7 {dimension_numbers = #tpu.dot_dimension_numbers<[1], [0], [0], [1], [0, 0, 1, 1], [], []>} : vector<16x128xf32>, vector<128x128xf32>, vector<16x128xf32> -> vector<16x128xf32>
    %11 = vector.extract_strided_slice %0 {offsets = [1, 0], sizes = [1, 128], strides = [1, 1]} : vector<8x128xf32> to vector<1x128xf32>
    %12 = vector.broadcast %11 : vector<1x128xf32> to vector<16x128xf32>
    %13 = arith.addf %10, %12 : vector<16x128xf32>
    %cst_8 = arith.constant 0.000000e+00 : f32
    %14 = vector.broadcast %cst_8 : f32 to vector<16x128xf32>
    %15 = arith.maximumf %13, %14 : vector<16x128xf32>
    %c256 = arith.constant 256 : index
    %c0_9 = arith.constant 0 : index
    %16 = vector.load %arg2[%c256, %c0_9] : memref<896x128xf32, #tpu.memory_space<vmem>>, vector<128x128xf32>
    %cst_10 = arith.constant dense<0.000000e+00> : vector<16x128xf32>
    %17 = tpu.matmul %15, %16, %cst_10 {dimension_numbers = #tpu.dot_dimension_numbers<[1], [0], [0], [1], [0, 0, 1, 1], [], []>} : vector<16x128xf32>, vector<128x128xf32>, vector<16x128xf32> -> vector<16x128xf32>
    %18 = vector.extract_strided_slice %0 {offsets = [2, 0], sizes = [1, 128], strides = [1, 1]} : vector<8x128xf32> to vector<1x128xf32>
    %19 = vector.broadcast %18 : vector<1x128xf32> to vector<16x128xf32>
    %20 = arith.addf %17, %19 : vector<16x128xf32>
    %cst_11 = arith.constant 0.000000e+00 : f32
    %21 = vector.broadcast %cst_11 : f32 to vector<16x128xf32>
    %22 = arith.maximumf %20, %21 : vector<16x128xf32>
    %c384 = arith.constant 384 : index
    %c0_12 = arith.constant 0 : index
    %23 = vector.load %arg2[%c384, %c0_12] : memref<896x128xf32, #tpu.memory_space<vmem>>, vector<128x128xf32>
    %cst_13 = arith.constant dense<0.000000e+00> : vector<16x128xf32>
    %24 = tpu.matmul %22, %23, %cst_13 {dimension_numbers = #tpu.dot_dimension_numbers<[1], [0], [0], [1], [0, 0, 1, 1], [], []>} : vector<16x128xf32>, vector<128x128xf32>, vector<16x128xf32> -> vector<16x128xf32>
    %25 = vector.extract_strided_slice %0 {offsets = [3, 0], sizes = [1, 128], strides = [1, 1]} : vector<8x128xf32> to vector<1x128xf32>
    %26 = vector.broadcast %25 : vector<1x128xf32> to vector<16x128xf32>
    %27 = arith.addf %24, %26 : vector<16x128xf32>
    %cst_14 = arith.constant 0.000000e+00 : f32
    %28 = vector.broadcast %cst_14 : f32 to vector<16x128xf32>
    %29 = arith.maximumf %27, %28 : vector<16x128xf32>
    %c512 = arith.constant 512 : index
    %c0_15 = arith.constant 0 : index
    %30 = vector.load %arg2[%c512, %c0_15] : memref<896x128xf32, #tpu.memory_space<vmem>>, vector<128x128xf32>
    %cst_16 = arith.constant dense<0.000000e+00> : vector<16x128xf32>
    %31 = tpu.matmul %29, %30, %cst_16 {dimension_numbers = #tpu.dot_dimension_numbers<[1], [0], [0], [1], [0, 0, 1, 1], [], []>} : vector<16x128xf32>, vector<128x128xf32>, vector<16x128xf32> -> vector<16x128xf32>
    %32 = vector.extract_strided_slice %0 {offsets = [4, 0], sizes = [1, 128], strides = [1, 1]} : vector<8x128xf32> to vector<1x128xf32>
    %33 = vector.broadcast %32 : vector<1x128xf32> to vector<16x128xf32>
    %34 = arith.addf %31, %33 : vector<16x128xf32>
    %cst_17 = arith.constant 0.000000e+00 : f32
    %35 = vector.broadcast %cst_17 : f32 to vector<16x128xf32>
    %36 = arith.maximumf %34, %35 : vector<16x128xf32>
    %c640 = arith.constant 640 : index
    %c0_18 = arith.constant 0 : index
    %37 = vector.load %arg2[%c640, %c0_18] : memref<896x128xf32, #tpu.memory_space<vmem>>, vector<128x128xf32>
    %cst_19 = arith.constant dense<0.000000e+00> : vector<16x128xf32>
    %38 = tpu.matmul %36, %37, %cst_19 {dimension_numbers = #tpu.dot_dimension_numbers<[1], [0], [0], [1], [0, 0, 1, 1], [], []>} : vector<16x128xf32>, vector<128x128xf32>, vector<16x128xf32> -> vector<16x128xf32>
    %39 = vector.extract_strided_slice %0 {offsets = [5, 0], sizes = [1, 128], strides = [1, 1]} : vector<8x128xf32> to vector<1x128xf32>
    %40 = vector.broadcast %39 : vector<1x128xf32> to vector<16x128xf32>
    %41 = arith.addf %38, %40 : vector<16x128xf32>
    %cst_20 = arith.constant 0.000000e+00 : f32
    %42 = vector.broadcast %cst_20 : f32 to vector<16x128xf32>
    %43 = arith.maximumf %41, %42 : vector<16x128xf32>
    %c768 = arith.constant 768 : index
    %c0_21 = arith.constant 0 : index
    %44 = vector.load %arg2[%c768, %c0_21] : memref<896x128xf32, #tpu.memory_space<vmem>>, vector<128x128xf32>
    %cst_22 = arith.constant dense<0.000000e+00> : vector<16x128xf32>
    %45 = tpu.matmul %43, %44, %cst_22 {dimension_numbers = #tpu.dot_dimension_numbers<[1], [0], [0], [1], [0, 0, 1, 1], [], []>} : vector<16x128xf32>, vector<128x128xf32>, vector<16x128xf32> -> vector<16x128xf32>
    %46 = vector.extract_strided_slice %0 {offsets = [6, 0], sizes = [1, 128], strides = [1, 1]} : vector<8x128xf32> to vector<1x128xf32>
    %47 = vector.broadcast %46 : vector<1x128xf32> to vector<16x128xf32>
    %48 = arith.addf %45, %47 : vector<16x128xf32>
    %c0_23 = arith.constant 0 : index
    %c0_24 = arith.constant 0 : index
    %49 = vector.load %arg4[%c0_23, %c0_24] : memref<16x128xf32, #tpu.memory_space<vmem>>, vector<16x128xf32>
    tpu.vector_store %arg4[%c0_23, %c0_24], %48 {strides = array<i32>} : memref<16x128xf32, #tpu.memory_space<vmem>>, vector<16x128xf32>,
    return
  }
  func.func @transform_0(%arg0: i32) -> (i32, i32) {
    %c0_i32 = arith.constant 0 : i32
    %c0_i32_0 = arith.constant 0 : i32
    %c0_i32_1 = arith.constant 0 : i32
    return %c0_i32, %c0_i32_0 : i32, i32
  }
  func.func @transform_1(%arg0: i32) -> (i32, i32) {
    %c0_i32 = arith.constant 0 : i32
    %c0_i32_0 = arith.constant 0 : i32
    %c0_i32_1 = arith.constant 0 : i32
    return %c0_i32, %c0_i32_0 : i32, i32
  }
  func.func @transform_2(%arg0: i32) -> (i32, i32) {
    %c0_i32 = arith.constant 0 : i32
    %c0_i32_0 = arith.constant 0 : i32
    %c0_i32_1 = arith.constant 0 : i32
    return %c0_i32, %c0_i32_0 : i32, i32
  }
  func.func @transform_3(%arg0: i32) -> (i32, i32) {
    %c0_i32 = arith.constant 0 : i32
    %c0_i32_0 = arith.constant 0 : i32
    %c0_i32_1 = arith.constant 0 : i32
    return %c0_i32, %c0_i32_0 : i32, i32
  }
}

</mosaic_0001>

<llo_original>
// kernel: tpu_custom_call.1
$region0: #{tpu_custom_call.1}
  #allocation0 [shape = 'u32[]', space=smem, size = 0x4, offset = 0x4, fixed_abs, tag = 'smem constant byte address 0x4 - core index']
  #allocation1 [shape = 'u32[72,128]{1,0:T(1,128)}', space=vmem, size = 0x9000, scoped, tag = 'internal scratch']
  %s0 = inlined_call_operand.hbm [shape: f32[16,128], index: 0, kind: input, shape index: {}]
  %s1 = inlined_call_operand.hbm [shape: f32[896,128], index: 1, kind: input, shape index: {}]
  %s2 = inlined_call_operand.hbm [shape: f32[8,128], index: 2, kind: input, shape index: {}]
  %s3 = inlined_call_operand.hbm [shape: f32[16,128], index: 3, kind: output, shape index: {}]
  %s4 = sld [smem:[#allocation0]]
  $region34: #{tpu_custom_call.1} parent=0
    _
  %s6 = ssub.s32 1, %s4
  %s7 = scalar_select 0, %s6, %s4
  $region1: #{tpu_custom_call.1} parent=0
    #allocation2 [shape = 'u8[8192]{0}', space=vmem, size = 0x2000, scoped, tag = 'input window, operand 0, single buffered']
    #allocation3 [shape = 's32[1]{0}', space=sflag, size = 0x4, scoped, tag = 'scoped memory for tpu_custom_call.1']
    #allocation4 [shape = 's32[1]{0}', space=sflag, size = 0x4, scoped, tag = 'scoped memory for tpu_custom_call.1']
    #allocation5 [shape = 'u8[458752]{0}', space=vmem, size = 0x70000, scoped, tag = 'input window, operand 1, single buffered']
    #allocation6 [shape = 's32[1]{0}', space=sflag, size = 0x4, scoped, tag = 'scoped memory for tpu_custom_call.1']
    #allocation7 [shape = 'u8[4096]{0}', space=vmem, size = 0x1000, scoped, tag = 'input window, operand 2, single buffered']
    #allocation8 [shape = 'u8[8192]{0}', space=vmem, size = 0x2000, scoped, tag = 'output window, operand 0, single buffered']
    %8 = vsyncpa [#allocation3], 0
    %9 = vsyncpa [#allocation6], 0
    %10 = vsyncpa [#allocation4], 0
    // Predicated region
    $region2: #{tpu_custom_call.1} parent=1 // pred_check
      _
    $region3: #{tpu_custom_call.1} parent=1 // pred_check_branch
      %12 = sbr.rel (0) target = $region5
    $region4: #{tpu_custom_call.1} parent=1 // pred_region
      %14 = vsyncadd [#allocation3], 0
      %s15 = sshll.u32 %s0, 4
      %s16 = int_to_ptr.hbm [resolvable:$true] %s15
      %s17 = sshll.u32 [#allocation2], 4
      %s18 = int_to_ptr.vmem [resolvable:$true] %s17
      %23 = dma.hbm_to_vmem [thread:$0]  %s16, 256, %s18, [#allocation3], 128, 128, 8
    $region5: #{tpu_custom_call.1} parent=1 // pred_fallthru
      _
    // Predicated region
    $region6: #{tpu_custom_call.1} parent=1 // pred_check
      _
    $region7: #{tpu_custom_call.1} parent=1 // pred_check_branch
      %25 = sbr.rel (0) target = $region9
    $region8: #{tpu_custom_call.1} parent=1 // pred_region
      %27 = vsyncadd [#allocation6], 0
      %s28 = sshll.u32 %s1, 4
      %s29 = int_to_ptr.hbm [resolvable:$true] %s28
      %s30 = sshll.u32 [#allocation5], 4
      %s31 = int_to_ptr.vmem [resolvable:$true] %s30
      %36 = dma.hbm_to_vmem [thread:$0]  %s29, 14336, %s31, [#allocation6], 128, 128, 8
    $region9: #{tpu_custom_call.1} parent=1 // pred_fallthru
      _
    // Predicated region
    $region10: #{tpu_custom_call.1} parent=1 // pred_check
      _
    $region11: #{tpu_custom_call.1} parent=1 // pred_check_branch
      %38 = sbr.rel (0) target = $region13
    $region12: #{tpu_custom_call.1} parent=1 // pred_region
      %40 = vsyncadd [#allocation6], 0
      %s42 = sshll.u32 %s2, 4
      %s43 = int_to_ptr.hbm [resolvable:$true] %s42
      %s44 = sshll.u32 [#allocation7], 4
      %s45 = int_to_ptr.vmem [resolvable:$true] %s44
      %47 = dma.hbm_to_vmem [thread:$0]  %s43, 128, %s45, [#allocation6]
    $region13: #{tpu_custom_call.1} parent=1 // pred_fallthru
      _
    // Predicated region
    $region14: #{tpu_custom_call.1} parent=1 // pred_check
      _
    $region15: #{tpu_custom_call.1} parent=1 // pred_check_branch
      %49 = sbr.rel (0) target = $region17
    $region16: #{tpu_custom_call.1} parent=1 // pred_region
      %51 = dma.done [#allocation3], 256
    $region17: #{tpu_custom_call.1} parent=1 // pred_fallthru
      _
    // Predicated region
    $region18: #{tpu_custom_call.1} parent=1 // pred_check
      _
    $region19: #{tpu_custom_call.1} parent=1 // pred_check_branch
      %53 = sbr.rel (0) target = $region21
    $region20: #{tpu_custom_call.1} parent=1 // pred_region
      %55 = dma.done [#allocation6], 14336
    $region21: #{tpu_custom_call.1} parent=1 // pred_fallthru
      _
    // Predicated region
    $region22: #{tpu_custom_call.1} parent=1 // pred_check
      _
    $region23: #{tpu_custom_call.1} parent=1 // pred_check_branch
      %57 = sbr.rel (0) target = $region25
    $region24: #{tpu_custom_call.1} parent=1 // pred_region
      %59 = dma.done [#allocation6], 128
    $region25: #{tpu_custom_call.1} parent=1 // pred_fallthru
      _
    %v60 = vld [vmem:[#allocation7] sm:$0xff]
    %v61 = vld [vmem:[#allocation2] sm:$0xff]
    %v62 = vld [vmem:[#allocation2 + $0x8] sm:$0xff]
    %v63 = vld [vmem:[#allocation5] sm:$0xff]
    %v64 = vld [vmem:[#allocation5 + $0x8] sm:$0xff]
    %v65 = vld [vmem:[#allocation5 + $0x10] sm:$0xff]
    %v66 = vld [vmem:[#allocation5 + $0x18] sm:$0xff]
    %v67 = vld [vmem:[#allocation5 + $0x20] sm:$0xff]
    %v68 = vld [vmem:[#allocation5 + $0x28] sm:$0xff]
    %v69 = vld [vmem:[#allocation5 + $0x30] sm:$0xff]
    %v70 = vld [vmem:[#allocation5 + $0x38] sm:$0xff]
    %v71 = vld [vmem:[#allocation5 + $0x40] sm:$0xff]
    %v72 = vld [vmem:[#allocation5 + $0x48] sm:$0xff]
    %v73 = vld [vmem:[#allocation5 + $0x50] sm:$0xff]
    %v74 = vld [vmem:[#allocation5 + $0x58] sm:$0xff]
    %v75 = vld [vmem:[#allocation5 + $0x60] sm:$0xff]
    %v76 = vld [vmem:[#allocation5 + $0x68] sm:$0xff]
    %v77 = vld [vmem:[#allocation5 + $0x70] sm:$0xff]
    %v78 = vld [vmem:[#allocation5 + $0x78] sm:$0xff]
    %v79 = vperm.slane %v60, 0
    %80 = vmatpush.msra.mxu0 %v78
    %81 = vmatpush.msra.mxu0 %v77
    %82 = vmatpush.msra.mxu0 %v76
    %83 = vmatpush.msra.mxu0 %v75
    %84 = vmatpush.msra.mxu0 %v74
    %85 = vmatpush.msra.mxu0 %v73
    %86 = vmatpush.msra.mxu0 %v72
    %87 = vmatpush.msra.mxu0 %v71
    %88 = vmatpush.msra.mxu0 %v70
    %89 = vmatpush.msra.mxu0 %v69
    %90 = vmatpush.msra.mxu0 %v68
    %91 = vmatpush.msra.mxu0 %v67
    %92 = vmatpush.msra.mxu0 %v66
    %93 = vmatpush.msra.mxu0 %v65
    %94 = vmatpush.msra.mxu0 %v64
    %95 = vmatpush.msra.mxu0 %v63
    %96 = vmatmul.f32.gmra.mxu0 %v61
    %v97 = vpop.f32.mrf.mxu0
    %v98 = vadd.f32 %v79, %v97
    %99 = vmatmul.f32.gmra.mxu0 %v62
    %v100 = vpop.f32.mrf.mxu0
    %v101 = vadd.f32 %v79, %v100
    %102 = vdwg.mxu0
    %v103 = vmax.f32 %v98, 0.0
    %v104 = vmax.f32 %v101, 0.0
    %v105 = vld [vmem:[#allocation5 + $0x80] sm:$0xff]
    %v106 = vld [vmem:[#allocation5 + $0x88] sm:$0xff]
    %v107 = vld [vmem:[#allocation5 + $0x90] sm:$0xff]
    %v108 = vld [vmem:[#allocation5 + $0x98] sm:$0xff]
    %v109 = vld [vmem:[#allocation5 + $0xa0] sm:$0xff]
    %v110 = vld [vmem:[#allocation5 + $0xa8] sm:$0xff]
    %v111 = vld [vmem:[#allocation5 + $0xb0] sm:$0xff]
    %v112 = vld [vmem:[#allocation5 + $0xb8] sm:$0xff]
    %v113 = vld [vmem:[#allocation5 + $0xc0] sm:$0xff]
    %v114 = vld [vmem:[#allocation5 + $0xc8] sm:$0xff]
    %v115 = vld [vmem:[#allocation5 + $0xd0] sm:$0xff]
    %v116 = vld [vmem:[#allocation5 + $0xd8] sm:$0xff]
    %v117 = vld [vmem:[#allocation5 + $0xe0] sm:$0xff]
    %v118 = vld [vmem:[#allocation5 + $0xe8] sm:$0xff]
    %v119 = vld [vmem:[#allocation5 + $0xf0] sm:$0xff]
    %v120 = vld [vmem:[#allocation5 + $0xf8] sm:$0xff]
    %v121 = vperm.slane %v60, 1
    %122 = vmatpush.msra.mxu0 %v120
    %123 = vmatpush.msra.mxu0 %v119
    %124 = vmatpush.msra.mxu0 %v118
    %125 = vmatpush.msra.mxu0 %v117
    %126 = vmatpush.msra.mxu0 %v116
    %127 = vmatpush.msra.mxu0 %v115
    %128 = vmatpush.msra.mxu0 %v114
    %129 = vmatpush.msra.mxu0 %v113
    %130 = vmatpush.msra.mxu0 %v112
    %131 = vmatpush.msra.mxu0 %v111
    %132 = vmatpush.msra.mxu0 %v110
    %133 = vmatpush.msra.mxu0 %v109
    %134 = vmatpush.msra.mxu0 %v108
    %135 = vmatpush.msra.mxu0 %v107
    %136 = vmatpush.msra.mxu0 %v106
    %137 = vmatpush.msra.mxu0 %v105
    %138 = vmatmul.f32.gmra.mxu0 %v103
    %v139 = vpop.f32.mrf.mxu0
    %v140 = vadd.f32 %v121, %v139
    %141 = vmatmul.f32.gmra.mxu0 %v104
    %v142 = vpop.f32.mrf.mxu0
    %v143 = vadd.f32 %v121, %v142
    %144 = vdwg.mxu0
    %v145 = vmax.f32 %v140, 0.0
    %v146 = vmax.f32 %v143, 0.0
    %v147 = vld [vmem:[#allocation5 + $0x100] sm:$0xff]
    %v148 = vld [vmem:[#allocation5 + $0x108] sm:$0xff]
    %v149 = vld [vmem:[#allocation5 + $0x110] sm:$0xff]
    %v150 = vld [vmem:[#allocation5 + $0x118] sm:$0xff]
    %v151 = vld [vmem:[#allocation5 + $0x120] sm:$0xff]
    %v152 = vld [vmem:[#allocation5 + $0x128] sm:$0xff]
    %v153 = vld [vmem:[#allocation5 + $0x130] sm:$0xff]
    %v154 = vld [vmem:[#allocation5 + $0x138] sm:$0xff]
    %v155 = vld [vmem:[#allocation5 + $0x140] sm:$0xff]
    %v156 = vld [vmem:[#allocation5 + $0x148] sm:$0xff]
    %v157 = vld [vmem:[#allocation5 + $0x150] sm:$0xff]
    %v158 = vld [vmem:[#allocation5 + $0x158] sm:$0xff]
    %v159 = vld [vmem:[#allocation5 + $0x160] sm:$0xff]
    %v160 = vld [vmem:[#allocation5 + $0x168] sm:$0xff]
    %v161 = vld [vmem:[#allocation5 + $0x170] sm:$0xff]
    %v162 = vld [vmem:[#allocation5 + $0x178] sm:$0xff]
    %v163 = vperm.slane %v60, 2
    %164 = vmatpush.msra.mxu0 %v162
    %165 = vmatpush.msra.mxu0 %v161
    %166 = vmatpush.msra.mxu0 %v160
    %167 = vmatpush.msra.mxu0 %v159
    %168 = vmatpush.msra.mxu0 %v158
    %169 = vmatpush.msra.mxu0 %v157
    %170 = vmatpush.msra.mxu0 %v156
    %171 = vmatpush.msra.mxu0 %v155
    %172 = vmatpush.msra.mxu0 %v154
    %173 = vmatpush.msra.mxu0 %v153
    %174 = vmatpush.msra.mxu0 %v152
    %175 = vmatpush.msra.mxu0 %v151
    %176 = vmatpush.msra.mxu0 %v150
    %177 = vmatpush.msra.mxu0 %v149
    %178 = vmatpush.msra.mxu0 %v148
    %179 = vmatpush.msra.mxu0 %v147
    %180 = vmatmul.f32.gmra.mxu0 %v145
    %v181 = vpop.f32.mrf.mxu0
    %v182 = vadd.f32 %v163, %v181
    %183 = vmatmul.f32.gmra.mxu0 %v146
    %v184 = vpop.f32.mrf.mxu0
    %v185 = vadd.f32 %v163, %v184
    %186 = vdwg.mxu0
    %v187 = vmax.f32 %v182, 0.0
    %v188 = vmax.f32 %v185, 0.0
    %v189 = vld [vmem:[#allocation5 + $0x180] sm:$0xff]
    %v190 = vld [vmem:[#allocation5 + $0x188] sm:$0xff]
    %v191 = vld [vmem:[#allocation5 + $0x190] sm:$0xff]
    %v192 = vld [vmem:[#allocation5 + $0x198] sm:$0xff]
    %v193 = vld [vmem:[#allocation5 + $0x1a0] sm:$0xff]
    %v194 = vld [vmem:[#allocation5 + $0x1a8] sm:$0xff]
    %v195 = vld [vmem:[#allocation5 + $0x1b0] sm:$0xff]
    %v196 = vld [vmem:[#allocation5 + $0x1b8] sm:$0xff]
    %v197 = vld [vmem:[#allocation5 + $0x1c0] sm:$0xff]
    %v198 = vld [vmem:[#allocation5 + $0x1c8] sm:$0xff]
    %v199 = vld [vmem:[#allocation5 + $0x1d0] sm:$0xff]
    %v200 = vld [vmem:[#allocation5 + $0x1d8] sm:$0xff]
    %v201 = vld [vmem:[#allocation5 + $0x1e0] sm:$0xff]
    %v202 = vld [vmem:[#allocation5 + $0x1e8] sm:$0xff]
    %v203 = vld [vmem:[#allocation5 + $0x1f0] sm:$0xff]
    %v204 = vld [vmem:[#allocation5 + $0x1f8] sm:$0xff]
    %v205 = vperm.slane %v60, 3
    %206 = vmatpush.msra.mxu0 %v204
    %207 = vmatpush.msra.mxu0 %v203
    %208 = vmatpush.msra.mxu0 %v202
    %209 = vmatpush.msra.mxu0 %v201
    %210 = vmatpush.msra.mxu0 %v200
    %211 = vmatpush.msra.mxu0 %v199
    %212 = vmatpush.msra.mxu0 %v198
    %213 = vmatpush.msra.mxu0 %v197
    %214 = vmatpush.msra.mxu0 %v196
    %215 = vmatpush.msra.mxu0 %v195
    %216 = vmatpush.msra.mxu0 %v194
    %217 = vmatpush.msra.mxu0 %v193
    %218 = vmatpush.msra.mxu0 %v192
    %219 = vmatpush.msra.mxu0 %v191
    %220 = vmatpush.msra.mxu0 %v190
    %221 = vmatpush.msra.mxu0 %v189
    %222 = vmatmul.f32.gmra.mxu0 %v187
    %v223 = vpop.f32.mrf.mxu0
    %v224 = vadd.f32 %v205, %v223
    %225 = vmatmul.f32.gmra.mxu0 %v188
    %v226 = vpop.f32.mrf.mxu0
    %v227 = vadd.f32 %v205, %v226
    %228 = vdwg.mxu0
    %v229 = vmax.f32 %v224, 0.0
    %v230 = vmax.f32 %v227, 0.0
    %v231 = vld [vmem:[#allocation5 + $0x200] sm:$0xff]
    %v232 = vld [vmem:[#allocation5 + $0x208] sm:$0xff]
    %v233 = vld [vmem:[#allocation5 + $0x210] sm:$0xff]
    %v234 = vld [vmem:[#allocation5 + $0x218] sm:$0xff]
    %v235 = vld [vmem:[#allocation5 + $0x220] sm:$0xff]
    %v236 = vld [vmem:[#allocation5 + $0x228] sm:$0xff]
    %v237 = vld [vmem:[#allocation5 + $0x230] sm:$0xff]
    %v238 = vld [vmem:[#allocation5 + $0x238] sm:$0xff]
    %v239 = vld [vmem:[#allocation5 + $0x240] sm:$0xff]
    %v240 = vld [vmem:[#allocation5 + $0x248] sm:$0xff]
    %v241 = vld [vmem:[#allocation5 + $0x250] sm:$0xff]
    %v242 = vld [vmem:[#allocation5 + $0x258] sm:$0xff]
    %v243 = vld [vmem:[#allocation5 + $0x260] sm:$0xff]
    %v244 = vld [vmem:[#allocation5 + $0x268] sm:$0xff]
    %v245 = vld [vmem:[#allocation5 + $0x270] sm:$0xff]
    %v246 = vld [vmem:[#allocation5 + $0x278] sm:$0xff]
    %v247 = vperm.slane %v60, 4
    %248 = vmatpush.msra.mxu0 %v246
    %249 = vmatpush.msra.mxu0 %v245
    %250 = vmatpush.msra.mxu0 %v244
    %251 = vmatpush.msra.mxu0 %v243
    %252 = vmatpush.msra.mxu0 %v242
    %253 = vmatpush.msra.mxu0 %v241
    %254 = vmatpush.msra.mxu0 %v240
    %255 = vmatpush.msra.mxu0 %v239
    %256 = vmatpush.msra.mxu0 %v238
    %257 = vmatpush.msra.mxu0 %v237
    %258 = vmatpush.msra.mxu0 %v236
    %259 = vmatpush.msra.mxu0 %v235
    %260 = vmatpush.msra.mxu0 %v234
    %261 = vmatpush.msra.mxu0 %v233
    %262 = vmatpush.msra.mxu0 %v232
    %263 = vmatpush.msra.mxu0 %v231
    %264 = vmatmul.f32.gmra.mxu0 %v229
    %v265 = vpop.f32.mrf.mxu0
    %v266 = vadd.f32 %v247, %v265
    %267 = vmatmul.f32.gmra.mxu0 %v230
    %v268 = vpop.f32.mrf.mxu0
    %v269 = vadd.f32 %v247, %v268
    %270 = vdwg.mxu0
    %v271 = vmax.f32 %v266, 0.0
    %v272 = vmax.f32 %v269, 0.0
    %v273 = vld [vmem:[#allocation5 + $0x280] sm:$0xff]
    %v274 = vld [vmem:[#allocation5 + $0x288] sm:$0xff]
    %v275 = vld [vmem:[#allocation5 + $0x290] sm:$0xff]
    %v276 = vld [vmem:[#allocation5 + $0x298] sm:$0xff]
    %v277 = vld [vmem:[#allocation5 + $0x2a0] sm:$0xff]
    %v278 = vld [vmem:[#allocation5 + $0x2a8] sm:$0xff]
    %v279 = vld [vmem:[#allocation5 + $0x2b0] sm:$0xff]
    %v280 = vld [vmem:[#allocation5 + $0x2b8] sm:$0xff]
    %v281 = vld [vmem:[#allocation5 + $0x2c0] sm:$0xff]
    %v282 = vld [vmem:[#allocation5 + $0x2c8] sm:$0xff]
    %v283 = vld [vmem:[#allocation5 + $0x2d0] sm:$0xff]
    %v284 = vld [vmem:[#allocation5 + $0x2d8] sm:$0xff]
    %v285 = vld [vmem:[#allocation5 + $0x2e0] sm:$0xff]
    %v286 = vld [vmem:[#allocation5 + $0x2e8] sm:$0xff]
    %v287 = vld [vmem:[#allocation5 + $0x2f0] sm:$0xff]
    %v288 = vld [vmem:[#allocation5 + $0x2f8] sm:$0xff]
    %v289 = vperm.slane %v60, 5
    %290 = vmatpush.msra.mxu0 %v288
    %291 = vmatpush.msra.mxu0 %v287
    %292 = vmatpush.msra.mxu0 %v286
    %293 = vmatpush.msra.mxu0 %v285
    %294 = vmatpush.msra.mxu0 %v284
    %295 = vmatpush.msra.mxu0 %v283
    %296 = vmatpush.msra.mxu0 %v282
    %297 = vmatpush.msra.mxu0 %v281
    %298 = vmatpush.msra.mxu0 %v280
    %299 = vmatpush.msra.mxu0 %v279
    %300 = vmatpush.msra.mxu0 %v278
    %301 = vmatpush.msra.mxu0 %v277
    %302 = vmatpush.msra.mxu0 %v276
    %303 = vmatpush.msra.mxu0 %v275
    %304 = vmatpush.msra.mxu0 %v274
    %305 = vmatpush.msra.mxu0 %v273
    %306 = vmatmul.f32.gmra.mxu0 %v271
    %v307 = vpop.f32.mrf.mxu0
    %v308 = vadd.f32 %v289, %v307
    %309 = vmatmul.f32.gmra.mxu0 %v272
    %v310 = vpop.f32.mrf.mxu0
    %v311 = vadd.f32 %v289, %v310
    %312 = vdwg.mxu0
    %v313 = vmax.f32 %v308, 0.0
    %v314 = vmax.f32 %v311, 0.0
    %v315 = vld [vmem:[#allocation5 + $0x300] sm:$0xff]
    %v316 = vld [vmem:[#allocation5 + $0x308] sm:$0xff]
    %v317 = vld [vmem:[#allocation5 + $0x310] sm:$0xff]
    %v318 = vld [vmem:[#allocation5 + $0x318] sm:$0xff]
    %v319 = vld [vmem:[#allocation5 + $0x320] sm:$0xff]
    %v320 = vld [vmem:[#allocation5 + $0x328] sm:$0xff]
    %v321 = vld [vmem:[#allocation5 + $0x330] sm:$0xff]
    %v322 = vld [vmem:[#allocation5 + $0x338] sm:$0xff]
    %v323 = vld [vmem:[#allocation5 + $0x340] sm:$0xff]
    %v324 = vld [vmem:[#allocation5 + $0x348] sm:$0xff]
    %v325 = vld [vmem:[#allocation5 + $0x350] sm:$0xff]
    %v326 = vld [vmem:[#allocation5 + $0x358] sm:$0xff]
    %v327 = vld [vmem:[#allocation5 + $0x360] sm:$0xff]
    %v328 = vld [vmem:[#allocation5 + $0x368] sm:$0xff]
    %v329 = vld [vmem:[#allocation5 + $0x370] sm:$0xff]
    %v330 = vld [vmem:[#allocation5 + $0x378] sm:$0xff]
    %v331 = vperm.slane %v60, 6
    %332 = vmatpush.msra.mxu0 %v330
    %333 = vmatpush.msra.mxu0 %v329
    %334 = vmatpush.msra.mxu0 %v328
    %335 = vmatpush.msra.mxu0 %v327
    %336 = vmatpush.msra.mxu0 %v326
    %337 = vmatpush.msra.mxu0 %v325
    %338 = vmatpush.msra.mxu0 %v324
    %339 = vmatpush.msra.mxu0 %v323
    %340 = vmatpush.msra.mxu0 %v322
    %341 = vmatpush.msra.mxu0 %v321
    %342 = vmatpush.msra.mxu0 %v320
    %343 = vmatpush.msra.mxu0 %v319
    %344 = vmatpush.msra.mxu0 %v318
    %345 = vmatpush.msra.mxu0 %v317
    %346 = vmatpush.msra.mxu0 %v316
    %347 = vmatpush.msra.mxu0 %v315
    %348 = vmatmul.f32.gmra.mxu0 %v313
    %v349 = vpop.f32.mrf.mxu0
    %v350 = vadd.f32 %v331, %v349
    %351 = vmatmul.f32.gmra.mxu0 %v314
    %v352 = vpop.f32.mrf.mxu0
    %v353 = vadd.f32 %v331, %v352
    %354 = vdwg.mxu0
    %355 = vst [vmem:[#allocation8] sm:$0xff] %v350
    %356 = vst [vmem:[#allocation8 + $0x8] sm:$0xff] %v353
    // Predicated region
    $region26: #{tpu_custom_call.1} parent=1 // pred_check
      _
    $region27: #{tpu_custom_call.1} parent=1 // pred_check_branch
      %358 = sbr.rel (0) target = $region29
    $region28: #{tpu_custom_call.1} parent=1 // pred_region
      %360 = vsyncadd [#allocation4], 0
      %s361 = sshll.u32 [#allocation8], 4
      %s362 = int_to_ptr.vmem [resolvable:$true] %s361
      %s363 = sshll.u32 %s3, 4
      %s364 = int_to_ptr.hbm [resolvable:$true] %s363
      %369 = dma.vmem_to_hbm [thread:$0]  %s362, 256, %s364, [#allocation4], 128, 128, 8
    $region29: #{tpu_custom_call.1} parent=1 // pred_fallthru
      _
    // Predicated region
    $region30: #{tpu_custom_call.1} parent=1 // pred_check
      _
    $region31: #{tpu_custom_call.1} parent=1 // pred_check_branch
      %371 = sbr.rel (0) target = $region33
    $region32: #{tpu_custom_call.1} parent=1 // pred_region
      %373 = dma.done [#allocation4], 256
    $region33: #{tpu_custom_call.1} parent=1 // pred_fallthru
      _
    %374 = vsyncpa [#allocation3], 1
    %375 = vsyncpa [#allocation6], 1
    %376 = vsyncpa [#allocation4], 1

</llo_original>
